<compile_context>
chip_gen: v7x
topology: tpu7x:2x2x1
jax: 0.10.0
libtpu: 0.0.40
codegen_flags: <defaults>
</compile_context>

<pallas_src>
import jax
import jax.numpy as jnp
from jax.experimental import pallas as pl
from jax.experimental.pallas import tpu as pltpu


_LANE = 128
_WIDE_LANES = (1024, 512, 256)            # try wider slabs when they divide n
_TARGET_BLOCK_BYTES = 2 * 1024 * 1024     # ~2 MiB per block for every dtype
_VMEM_LIMIT_BYTES = 24 * 1024 * 1024      # 2 arrays x 2 bufs x 2 MiB + headroom


def _mish_kernel(x_ref, o_ref):
    x = x_ref[...].astype(jnp.float32)
    # mish(x) = x * tanh(softplus(x)) = x * t*(t+2) / (t*(t+2) + 2),  t = e^x.
    # One exp (EUP) instead of exp + log1p + tanh.  Clamp at 20: beyond that
    # num + 2 == num in f32, the ratio rounds to 1 and y == x, so no extra
    # compare/select is needed.
    t = jnp.exp(jnp.minimum(x, 20.0))
    num = t * (t + 2.0)
    # Exact (approx=False) reciprocal keeps the divide off the VALU slot.
    y = x * (num * pl.reciprocal(num + 2.0, approx=False))
    o_ref[...] = y.astype(o_ref.dtype)


def _sublane_multiple(dtype) -> int:
    return {4: 8, 2: 16, 1: 32}.get(jnp.dtype(dtype).itemsize, 8)


def _round_up(a: int, b: int) -> int:
    return -(-a // b) * b


def _mish_2d(x2d: jax.Array) -> jax.Array:
    """Run the mish kernel on a lane-dense (rows, lane) slab."""
    rows, lane = x2d.shape
    dtype = x2d.dtype
    itemsize = jnp.dtype(dtype).itemsize
    sub = _sublane_multiple(dtype)

    # ~2 MiB per block regardless of dtype (4096 rows f32 / 8192 rows bf16 at
    # lane=128), so per-grid-step overhead stays amortized for narrow dtypes.
    target_rows = max(sub, _TARGET_BLOCK_BYTES // (lane * itemsize))
    # Cap at ~half the rows (rounded to a sublane tile): the 1-D parallel grid
    # then has >= 2 steps whenever possible, so v7x's two TensorCores both get
    # a share of the HBM traffic.
    half_rows = _round_up(-(-rows // 2), sub)
    block_rows = max(sub, min(target_rows, half_rows))
    grid = (pl.cdiv(rows, block_rows),)  # partial last block is masked

    n = rows * lane
    return pl.pallas_call(
        _mish_kernel,
        out_shape=jax.ShapeDtypeStruct((rows, lane), dtype),
        grid_spec=pltpu.PrefetchScalarGridSpec(
            num_scalar_prefetch=0,
            grid=grid,
            in_specs=[pl.BlockSpec((block_rows, lane), lambda i: (i, 0))],
            out_specs=pl.BlockSpec((block_rows, lane), lambda i: (i, 0)),
        ),
        compiler_params=pltpu.CompilerParams(
            dimension_semantics=("parallel",),
            vmem_limit_bytes=_VMEM_LIMIT_BYTES,
        ),
        cost_estimate=pl.CostEstimate(
            flops=6 * n,
            transcendentals=n,
            bytes_accessed=2 * n * itemsize,
        ),
    )(x2d)


def _mish_flat(flat: jax.Array) -> jax.Array:
    """flat.size must be a multiple of 128."""
    n = flat.shape[0]
    lane = _LANE
    for cand in _WIDE_LANES:
        if n % cand == 0:
            lane = cand
            break
    return _mish_2d(flat.reshape(-1, lane)).reshape(-1)


def mish_pallas(x: jax.Array) -> jax.Array:
    """Elementwise mish activation via a Pallas TPU kernel. Any shape/dtype."""
    orig_shape = x.shape
    flat = x.reshape(-1)
    n = flat.shape[0]
    if n == 0:
        return x

    rem = n % _LANE
    if rem == 0:
        # Common case: reshape of a contiguous array is free, zero extra passes.
        out_flat = _mish_flat(flat)
    else:
        # Unaligned tail: pad with < 128 zeros, run the kernel on the padded
        # slab, slice the output.  ~One extra pass instead of the old
        # slice + concatenate (two extra full-array HBM passes).
        out_flat = _mish_flat(jnp.pad(flat, (0, _LANE - rem)))[:n]
    return out_flat.reshape(orig_shape)


def mish_ref(x: jax.Array) -> jax.Array:
    """Pure-JAX reference: x * tanh(softplus(x)) (math in f32)."""
    xf = x.astype(jnp.float32)
    return (xf * jnp.tanh(jax.nn.softplus(xf))).astype(x.dtype)


if __name__ == "__main__":
    key = jax.random.PRNGKey(0)

    # 1) NCHW input, as the module would receive from a conv stack.
    x = jax.random.normal(key, (2, 4, 16, 16), dtype=jnp.float32) * 3.0
    out = mish_pallas(x)
    jax.block_until_ready(out)
    ref = mish_ref(x)
    assert out.shape == x.shape and out.dtype == x.dtype
    assert jnp.allclose(out, ref, atol=1e-5, rtol=1e-5), (
        f"max abs err = {jnp.max(jnp.abs(out - ref))}"
    )

    # 2) Extreme values exercise the clamp / rational-form behaviour.
    x2 = jnp.linspace(-40.0, 40.0, 1024, dtype=jnp.float32).reshape(8, 16, 8)
    out2 = mish_pallas(x2)
    jax.block_until_ready(out2)
    assert jnp.allclose(out2, mish_ref(x2), atol=1e-5, rtol=1e-5), (
        f"max abs err (extremes) = {jnp.max(jnp.abs(out2 - mish_ref(x2)))}"
    )

    # 3) Unaligned element count (105 < 128) exercises the pad/slice path.
    x3 = jax.random.normal(jax.random.PRNGKey(1), (3, 5, 7), dtype=jnp.float32)
    out3 = mish_pallas(x3)
    jax.block_until_ready(out3)
    assert jnp.allclose(out3, mish_ref(x3), atol=1e-5, rtol=1e-5), (
        f"max abs err (unaligned) = {jnp.max(jnp.abs(out3 - mish_ref(x3)))}"
    )

    # 4) bf16 exercises the dtype-scaled block rows (sublane multiple 16).
    xb = x.astype(jnp.bfloat16)
    outb = mish_pallas(xb)
    jax.block_until_ready(outb)
    assert outb.dtype == jnp.bfloat16
    assert jnp.allclose(outb.astype(jnp.float32),
                        mish_ref(xb.astype(jnp.float32)),
                        atol=3e-2, rtol=3e-2), "bf16 mismatch"

    print("KERNEL_OK")
</pallas_src>

<mosaic_0001>
module attributes {stable_mosaic.version = 11 : i64} {
  func.func @_mish_kernel(%arg0: i32, %arg1: memref<8x1024xf32, #tpu.memory_space<vmem>>, %arg2: memref<8x1024xf32, #tpu.memory_space<vmem>>) attributes {dimension_semantics = [#tpu.dimension_semantics<parallel>], iteration_bounds = array<i64: 1>, scalar_prefetch = 0 : i64, scratch_operands = 0 : i64, tpu.core_type = #tpu.core_type<tc>, window_params = [{transform_indices = @transform_0, window_bounds = array<i64: 8, 1024>}, {transform_indices = @transform_1, window_bounds = array<i64: 8, 1024>}]} {
    %c0 = arith.constant 0 : index
    %c0_0 = arith.constant 0 : index
    %0 = vector.load %arg1[%c0, %c0_0] : memref<8x1024xf32, #tpu.memory_space<vmem>>, vector<8x1024xf32>
    %cst = arith.constant 2.000000e+01 : f32
    %1 = vector.broadcast %cst : f32 to vector<8x1024xf32>
    %2 = arith.minimumf %0, %1 : vector<8x1024xf32>
    %3 = math.exp %2 : vector<8x1024xf32>
    %cst_1 = arith.constant 2.000000e+00 : f32
    %4 = vector.broadcast %cst_1 : f32 to vector<8x1024xf32>
    %5 = arith.addf %3, %4 : vector<8x1024xf32>
    %6 = arith.mulf %3, %5 : vector<8x1024xf32>
    %cst_2 = arith.constant 2.000000e+00 : f32
    %7 = vector.broadcast %cst_2 : f32 to vector<8x1024xf32>
    %8 = arith.addf %6, %7 : vector<8x1024xf32>
    %9 = tpu.reciprocal %8 : vector<8x1024xf32> -> vector<8x1024xf32>
    %10 = arith.mulf %6, %9 : vector<8x1024xf32>
    %11 = arith.mulf %0, %10 : vector<8x1024xf32>
    %c0_3 = arith.constant 0 : index
    %c0_4 = arith.constant 0 : index
    %12 = vector.load %arg2[%c0_3, %c0_4] : memref<8x1024xf32, #tpu.memory_space<vmem>>, vector<8x1024xf32>
    tpu.vector_store %arg2[%c0_3, %c0_4], %11 {strides = array<i32>} : memref<8x1024xf32, #tpu.memory_space<vmem>>, vector<8x1024xf32>,
    return
  }
  func.func @transform_0(%arg0: i32) -> (i32, i32) {
    %c0_i32 = arith.constant 0 : i32
    %c0_i32_0 = arith.constant 0 : i32
    return %arg0, %c0_i32 : i32, i32
  }
  func.func @transform_1(%arg0: i32) -> (i32, i32) {
    %c0_i32 = arith.constant 0 : i32
    %c0_i32_0 = arith.constant 0 : i32
    return %arg0, %c0_i32 : i32, i32
  }
}

</mosaic_0001>

<llo_original>
// kernel: tpu_custom_call.1
$region0: #{tpu_custom_call.1}
  #allocation0 [shape = 'u32[]', space=smem, size = 0x4, offset = 0x4, fixed_abs, tag = 'smem constant byte address 0x4 - core index']
  #allocation1 [shape = 'u32[144,128]{1,0:T(1,128)}', space=vmem, size = 0x12000, scoped, tag = 'internal scratch']
  %s0 = inlined_call_operand.hbm [shape: f32[2,1024], index: 0, kind: input, shape index: {}]
  %s1 = inlined_call_operand.hbm [shape: f32[2,1024], index: 1, kind: output, shape index: {}]
  %s2 = sld [smem:[#allocation0]]
  $region18: #{tpu_custom_call.1} parent=0
    _
  %s4 = ssub.s32 1, %s2
  %s5 = scalar_select 0, %s4, %s2
  $region1: #{tpu_custom_call.1} parent=0
    #allocation2 [shape = 'u8[32768]{0}', space=vmem, size = 0x8000, scoped, tag = 'input window, operand 0, single buffered']
    #allocation3 [shape = 's32[1]{0}', space=sflag, size = 0x4, scoped, tag = 'scoped memory for tpu_custom_call.1']
    #allocation4 [shape = 's32[1]{0}', space=sflag, size = 0x4, scoped, tag = 'scoped memory for tpu_custom_call.1']
    #allocation5 [shape = 'u8[32768]{0}', space=vmem, size = 0x8000, scoped, tag = 'output window, operand 0, single buffered']
    %6 = vsyncpa [#allocation3], 0
    %7 = vsyncpa [#allocation4], 0
    // Predicated region
    $region2: #{tpu_custom_call.1} parent=1 // pred_check
      _
    $region3: #{tpu_custom_call.1} parent=1 // pred_check_branch
      %9 = sbr.rel (0) target = $region5
    $region4: #{tpu_custom_call.1} parent=1 // pred_region
      %s11 = ssub.s32 1024, 256
      %12 = vsyncadd [#allocation3], %s11
      %s13 = sshll.u32 [#allocation2], 4
      %s14 = int_to_ptr.vmem [resolvable:$true] %s13
      %19 = dma.hbm_to_vmem [thread:$0]  %s0, 256, %s14, [#allocation3], 256, 256, 16
    $region5: #{tpu_custom_call.1} parent=1 // pred_fallthru
      _
    // Predicated region
    $region6: #{tpu_custom_call.1} parent=1 // pred_check
      _
    $region7: #{tpu_custom_call.1} parent=1 // pred_check_branch
      %21 = sbr.rel (0) target = $region9
    $region8: #{tpu_custom_call.1} parent=1 // pred_region
      %22 = dma.done [#allocation3], 1024
    $region9: #{tpu_custom_call.1} parent=1 // pred_fallthru
      _
    %v23 = vld [vmem:[#allocation2] sm:$0xff]
    %v24 = vld [vmem:[#allocation2 + $0x8] sm:$0xff]
    %v25 = vld [vmem:[#allocation2 + $0x10] sm:$0xff]
    %v26 = vld [vmem:[#allocation2 + $0x18] sm:$0xff]
    %v27 = vld [vmem:[#allocation2 + $0x20] sm:$0xff]
    %v28 = vld [vmem:[#allocation2 + $0x28] sm:$0xff]
    %v29 = vld [vmem:[#allocation2 + $0x30] sm:$0xff]
    %v30 = vld [vmem:[#allocation2 + $0x38] sm:$0xff]
    %v31 = vmin.f32 %v23, 20.0
    %v32 = vmin.f32 %v24, 20.0
    %v33 = vmin.f32 %v25, 20.0
    %v34 = vmin.f32 %v26, 20.0
    %v35 = vmin.f32 %v27, 20.0
    %v36 = vmin.f32 %v28, 20.0
    %v37 = vmin.f32 %v29, 20.0
    %v38 = vmin.f32 %v30, 20.0
    %v39 = vmul.f32 %v31, 1.442695
    %v40 = vpow.pop %v39
    %v41 = vmul.f32 %v32, 1.442695
    %v42 = vpow.pop %v41
    %v43 = vmul.f32 %v33, 1.442695
    %v44 = vpow.pop %v43
    %v45 = vmul.f32 %v34, 1.442695
    %v46 = vpow.pop %v45
    %v47 = vmul.f32 %v35, 1.442695
    %v48 = vpow.pop %v47
    %v49 = vmul.f32 %v36, 1.442695
    %v50 = vpow.pop %v49
    %v51 = vmul.f32 %v37, 1.442695
    %v52 = vpow.pop %v51
    %v53 = vmul.f32 %v38, 1.442695
    %v54 = vpow.pop %v53
    %v55 = vadd.f32 %v40, 2.0
    %v56 = vadd.f32 %v42, 2.0
    %v57 = vadd.f32 %v44, 2.0
    %v58 = vadd.f32 %v46, 2.0
    %v59 = vadd.f32 %v48, 2.0
    %v60 = vadd.f32 %v50, 2.0
    %v61 = vadd.f32 %v52, 2.0
    %v62 = vadd.f32 %v54, 2.0
    %v63 = vmul.f32 %v40, %v55
    %v64 = vmul.f32 %v42, %v56
    %v65 = vmul.f32 %v44, %v57
    %v66 = vmul.f32 %v46, %v58
    %v67 = vmul.f32 %v48, %v59
    %v68 = vmul.f32 %v50, %v60
    %v69 = vmul.f32 %v52, %v61
    %v70 = vmul.f32 %v54, %v62
    %v71 = vadd.f32 %v63, 2.0
    %v72 = vadd.f32 %v64, 2.0
    %v73 = vadd.f32 %v65, 2.0
    %v74 = vadd.f32 %v66, 2.0
    %v75 = vadd.f32 %v67, 2.0
    %v76 = vadd.f32 %v68, 2.0
    %v77 = vadd.f32 %v69, 2.0
    %v78 = vadd.f32 %v70, 2.0
    %v79 = vrcp.pop %v71
    %v80 = vrcp.pop %v72
    %v81 = vrcp.pop %v73
    %v82 = vrcp.pop %v74
    %v83 = vrcp.pop %v75
    %v84 = vrcp.pop %v76
    %v85 = vrcp.pop %v77
    %v86 = vrcp.pop %v78
    %v87 = vmul.f32 %v63, %v79
    %v88 = vmul.f32 %v64, %v80
    %v89 = vmul.f32 %v65, %v81
    %v90 = vmul.f32 %v66, %v82
    %v91 = vmul.f32 %v67, %v83
    %v92 = vmul.f32 %v68, %v84
    %v93 = vmul.f32 %v69, %v85
    %v94 = vmul.f32 %v70, %v86
    %v95 = vmul.f32 %v23, %v87
    %v96 = vmul.f32 %v24, %v88
    %v97 = vmul.f32 %v25, %v89
    %v98 = vmul.f32 %v26, %v90
    %v99 = vmul.f32 %v27, %v91
    %v100 = vmul.f32 %v28, %v92
    %v101 = vmul.f32 %v29, %v93
    %v102 = vmul.f32 %v30, %v94
    %103 = vst [vmem:[#allocation5] sm:$0xff] %v95
    %104 = vst [vmem:[#allocation5 + $0x8] sm:$0xff] %v96
    %105 = vst [vmem:[#allocation5 + $0x10] sm:$0xff] %v97
    %106 = vst [vmem:[#allocation5 + $0x18] sm:$0xff] %v98
    %107 = vst [vmem:[#allocation5 + $0x20] sm:$0xff] %v99
    %108 = vst [vmem:[#allocation5 + $0x28] sm:$0xff] %v100
    %109 = vst [vmem:[#allocation5 + $0x30] sm:$0xff] %v101
    %110 = vst [vmem:[#allocation5 + $0x38] sm:$0xff] %v102
    // Predicated region
    $region10: #{tpu_custom_call.1} parent=1 // pred_check
      _
    $region11: #{tpu_custom_call.1} parent=1 // pred_check_branch
      %112 = sbr.rel (0) target = $region13
    $region12: #{tpu_custom_call.1} parent=1 // pred_region
      %s114 = ssub.s32 1024, 256
      %115 = vsyncadd [#allocation4], %s114
      %s116 = sshll.u32 [#allocation5], 4
      %s117 = int_to_ptr.vmem [resolvable:$true] %s116
      %122 = dma.vmem_to_hbm [thread:$0]  %s117, 256, %s1, [#allocation4], 256, 256, 16
    $region13: #{tpu_custom_call.1} parent=1 // pred_fallthru
      _
    // Predicated region
    $region14: #{tpu_custom_call.1} parent=1 // pred_check
      _
    $region15: #{tpu_custom_call.1} parent=1 // pred_check_branch
      %124 = sbr.rel (0) target = $region17
    $region16: #{tpu_custom_call.1} parent=1 // pred_region
      %125 = dma.done [#allocation4], 1024
    $region17: #{tpu_custom_call.1} parent=1 // pred_fallthru
      _
    %126 = vsyncpa [#allocation3], 1
    %127 = vsyncpa [#allocation4], 1

</llo_original>
